<compile_context>
chip_gen: v7x
topology: tpu7x:2x2x1
jax: 0.10.0
libtpu: 0.0.40
codegen_flags: <defaults>
</compile_context>

<pallas_src>
import jax
import jax.numpy as jnp
from jax.experimental import pallas as pl
from jax.experimental.pallas import tpu as pltpu


def _round_up(x, m):
    return ((x + m - 1) // m) * m


# ---------------------------------------------------------------------------
# Pallas kernel: fused 3-layer MLP  (Linear -> LeakyReLU -> Linear ->
#                                    LeakyReLU -> Linear -> Tanh)
# One grid step processes a (TILE_B, K_pad) batch tile; all weights resident.
# ---------------------------------------------------------------------------
def _generator_mlp_kernel(x_ref, w1_ref, b1_ref, w2_ref, b2_ref,
                          w3_ref, b3_ref, o_ref):
    x = x_ref[...]                                   # bf16 (TILE_B, K_pad)

    # Layer 1: Linear(K_pad -> 128) + LeakyReLU(0.2)    (bf16 MXU, f32 acc)
    h1 = jnp.dot(x, w1_ref[...], preferred_element_type=jnp.float32)
    h1 = h1 + b1_ref[...]
    h1 = jnp.where(h1 > 0, h1, 0.2 * h1)

    # Layer 2: Linear(128 -> 256) + LeakyReLU(0.2)
    h2 = jnp.dot(h1.astype(jnp.bfloat16), w2_ref[...],
                 preferred_element_type=jnp.float32)
    h2 = h2 + b2_ref[...]
    h2 = jnp.where(h2 > 0, h2, 0.2 * h2)

    # Layer 3: Linear(256 -> N_pad) + Tanh
    h3 = jnp.dot(h2.astype(jnp.bfloat16), w3_ref[...],
                 preferred_element_type=jnp.float32)
    h3 = h3 + b3_ref[...]
    o_ref[...] = jnp.tanh(h3).astype(o_ref.dtype)


def generator_mlp(x, w1, b1, w2, b2, w3, b3, *, tile_b=256):
    """Fused MLP.  x: (B, K_pad) bf16, weights bf16, biases f32 (1, F)."""
    B, K = x.shape
    N = w3.shape[1]          # already lane-padded (multiple of 128)

    # Batch tiling: multiple of 8 sublanes; pad B up to a tile multiple.
    tb = min(tile_b, _round_up(B, 8))
    Bp = _round_up(B, tb)
    if Bp != B:
        x = jnp.pad(x, ((0, Bp - B), (0, 0)))
    grid = (Bp // tb,)

    flops = 2 * Bp * (K * w1.shape[1]
                      + w2.shape[0] * w2.shape[1]
                      + w3.shape[0] * N)
    bytes_accessed = (Bp * K * 2                      # x (bf16)
                      + (w1.size + w2.size + w3.size) * 2
                      + (b1.size + b2.size + b3.size) * 4
                      + Bp * N * 4)                   # output (f32)

    out = pl.pallas_call(
        _generator_mlp_kernel,
        out_shape=jax.ShapeDtypeStruct((Bp, N), jnp.float32),
        grid_spec=pltpu.PrefetchScalarGridSpec(
            num_scalar_prefetch=0,
            grid=grid,
            in_specs=[
                pl.BlockSpec((tb, K), lambda i: (i, 0)),       # x: batch-tiled
                pl.BlockSpec(w1.shape, lambda i: (0, 0)),      # weights/biases:
                pl.BlockSpec(b1.shape, lambda i: (0, 0)),      # constant block,
                pl.BlockSpec(w2.shape, lambda i: (0, 0)),      # VMEM-resident
                pl.BlockSpec(b2.shape, lambda i: (0, 0)),
                pl.BlockSpec(w3.shape, lambda i: (0, 0)),
                pl.BlockSpec(b3.shape, lambda i: (0, 0)),
            ],
            out_specs=pl.BlockSpec((tb, N), lambda i: (i, 0)),
        ),
        compiler_params=pltpu.CompilerParams(
            dimension_semantics=("parallel",)),
        cost_estimate=pl.CostEstimate(
            flops=flops, transcendentals=Bp * N,
            bytes_accessed=bytes_accessed),
    )(x, w1, b1, w2, b2, w3, b3)

    return out[:B]


# ---------------------------------------------------------------------------
# Generator module (parameter setup + forward glue)
# ---------------------------------------------------------------------------
class Generator:
    def __init__(self, latent_dim, n_features, n_labels, label_emb_dim=4,
                 key=jax.random.PRNGKey(0)):
        self.latent_dim = latent_dim
        self.n_features = n_features
        self.label_emb_dim = label_emb_dim

        in1 = latent_dim + label_emb_dim
        self.in_dim = in1
        self.in_pad = _round_up(in1, 128)        # lane-dense / single MXU tile
        self.out_pad = _round_up(n_features, 128)

        ks = jax.random.split(key, 7)

        def linear_init(kw, kb, fan_in, fan_out):
            # matches nn.Linear default init: U(-1/sqrt(fan_in), 1/sqrt(fan_in))
            bound = 1.0 / jnp.sqrt(fan_in)
            w = jax.random.uniform(kw, (fan_in, fan_out), jnp.float32,
                                   -bound, bound)
            b = jax.random.uniform(kb, (1, fan_out), jnp.float32,
                                   -bound, bound)
            return w, b

        # nn.Embedding default init: N(0, 1)
        self.label_embed = jax.random.normal(
            ks[0], (n_labels, label_emb_dim), jnp.float32)

        w1, b1 = linear_init(ks[1], ks[2], in1, 128)
        w2, b2 = linear_init(ks[3], ks[4], 128, 256)
        w3, b3 = linear_init(ks[5], ks[6], 256, n_features)

        # Pre-pad once at init (zero rows/cols -> exact zero contribution):
        #   w1: (in1,128) -> (in_pad,128);  w3/b3: (...,n_features) -> (...,out_pad)
        w1 = jnp.pad(w1, ((0, self.in_pad - in1), (0, 0)))
        w3 = jnp.pad(w3, ((0, 0), (0, self.out_pad - n_features)))
        b3 = jnp.pad(b3, ((0, 0), (0, self.out_pad - n_features)))

        # Matmul operands in bf16 (MXU-native); biases stay f32.
        self.w1 = w1.astype(jnp.bfloat16)
        self.w2 = w2.astype(jnp.bfloat16)
        self.w3 = w3.astype(jnp.bfloat16)
        self.b1, self.b2, self.b3 = b1, b2, b3

    def __call__(self, z, labels):
        # glue: embedding gather + concat (same as torch.cat([z, emb], dim=1))
        label_vec = jnp.take(self.label_embed, labels, axis=0)
        x = jnp.concatenate([z, label_vec], axis=1)
        # zero-pad feature dim to a lane-dense 128 multiple, cast to bf16
        x = jnp.pad(x, ((0, 0), (0, self.in_pad - self.in_dim)))
        x = x.astype(jnp.bfloat16)
        out = generator_mlp(x, self.w1, self.b1, self.w2, self.b2,
                            self.w3, self.b3)
        return out[:, : self.n_features]


# ---------------------------------------------------------------------------
# Pure-JAX reference (same bf16-rounded operands) for a correctness check
# ---------------------------------------------------------------------------
def _reference(gen, z, labels):
    label_vec = jnp.take(gen.label_embed, labels, axis=0)
    x = jnp.concatenate([z, label_vec], axis=1)
    x = jnp.pad(x, ((0, 0), (0, gen.in_pad - gen.in_dim)))
    x = x.astype(jnp.bfloat16).astype(jnp.float32)

    w1 = gen.w1.astype(jnp.float32)
    w2 = gen.w2.astype(jnp.float32)
    w3 = gen.w3.astype(jnp.float32)

    h = x @ w1 + gen.b1
    h = jnp.where(h > 0, h, 0.2 * h)
    h = h.astype(jnp.bfloat16).astype(jnp.float32) @ w2 + gen.b2
    h = jnp.where(h > 0, h, 0.2 * h)
    h = h.astype(jnp.bfloat16).astype(jnp.float32) @ w3 + gen.b3
    return jnp.tanh(h)[:, : gen.n_features]


if __name__ == "__main__":
    latent_dim = 32
    n_features = 64
    n_labels = 10
    label_emb_dim = 4

    key = jax.random.PRNGKey(0)
    k_param, k_z1, k_l1, k_z2, k_l2 = jax.random.split(key, 5)

    gen = Generator(latent_dim, n_features, n_labels, label_emb_dim,
                    key=k_param)

    # Small batch (single grid step).
    z1 = jax.random.normal(k_z1, (8, latent_dim), jnp.float32)
    lab1 = jax.random.randint(k_l1, (8,), 0, n_labels, jnp.int32)
    out1 = jax.block_until_ready(gen(z1, lab1))
    ref1 = _reference(gen, z1, lab1)
    assert out1.shape == (8, n_features)
    assert jnp.allclose(out1, ref1, atol=2e-2, rtol=2e-2)

    # Larger, non-tile-multiple batch (exercises grid pipelining + padding).
    z2 = jax.random.normal(k_z2, (300, latent_dim), jnp.float32)
    lab2 = jax.random.randint(k_l2, (300,), 0, n_labels, jnp.int32)
    out2 = jax.block_until_ready(gen(z2, lab2))
    ref2 = _reference(gen, z2, lab2)
    assert out2.shape == (300, n_features)
    assert jnp.allclose(out2, ref2, atol=2e-2, rtol=2e-2)

    print("KERNEL_OK")
</pallas_src>

<mosaic_0001>
module attributes {stable_mosaic.version = 11 : i64} {
  func.func @_generator_mlp_kernel(%arg0: i32, %arg1: memref<8x128xbf16, #tpu.memory_space<vmem>>, %arg2: memref<128x128xbf16, #tpu.memory_space<vmem>>, %arg3: memref<1x128xf32, #tpu.memory_space<vmem>>, %arg4: memref<128x256xbf16, #tpu.memory_space<vmem>>, %arg5: memref<1x256xf32, #tpu.memory_space<vmem>>, %arg6: memref<256x128xbf16, #tpu.memory_space<vmem>>, %arg7: memref<1x128xf32, #tpu.memory_space<vmem>>, %arg8: memref<8x128xf32, #tpu.memory_space<vmem>>) attributes {dimension_semantics = [#tpu.dimension_semantics<parallel>], iteration_bounds = array<i64: 1>, scalar_prefetch = 0 : i64, scratch_operands = 0 : i64, tpu.core_type = #tpu.core_type<tc>, window_params = [{transform_indices = @transform_0, window_bounds = array<i64: 8, 128>}, {pipeline_mode = #tpu.pipeline_mode<synchronous>, transform_indices = @transform_1, window_bounds = array<i64: 128, 128>}, {pipeline_mode = #tpu.pipeline_mode<synchronous>, transform_indices = @transform_2, window_bounds = array<i64: 1, 128>}, {pipeline_mode = #tpu.pipeline_mode<synchronous>, transform_indices = @transform_3, window_bounds = array<i64: 128, 256>}, {pipeline_mode = #tpu.pipeline_mode<synchronous>, transform_indices = @transform_4, window_bounds = array<i64: 1, 256>}, {pipeline_mode = #tpu.pipeline_mode<synchronous>, transform_indices = @transform_5, window_bounds = array<i64: 256, 128>}, {pipeline_mode = #tpu.pipeline_mode<synchronous>, transform_indices = @transform_6, window_bounds = array<i64: 1, 128>}, {transform_indices = @transform_7, window_bounds = array<i64: 8, 128>}]} {
    %c0 = arith.constant 0 : index
    %c0_0 = arith.constant 0 : index
    %0 = vector.load %arg1[%c0, %c0_0] : memref<8x128xbf16, #tpu.memory_space<vmem>>, vector<8x128xbf16>
    %c0_1 = arith.constant 0 : index
    %c0_2 = arith.constant 0 : index
    %1 = vector.load %arg2[%c0_1, %c0_2] : memref<128x128xbf16, #tpu.memory_space<vmem>>, vector<128x128xbf16>
    %cst = arith.constant dense<0.000000e+00> : vector<8x128xf32>
    %2 = tpu.matmul %0, %1, %cst {dimension_numbers = #tpu.dot_dimension_numbers<[1], [0], [0], [1], [0, 0, 1, 1], [], []>} : vector<8x128xbf16>, vector<128x128xbf16>, vector<8x128xf32> -> vector<8x128xf32>
    %c0_3 = arith.constant 0 : index
    %c0_4 = arith.constant 0 : index
    %3 = vector.load %arg3[%c0_3, %c0_4] : memref<1x128xf32, #tpu.memory_space<vmem>>, vector<1x128xf32>
    %4 = vector.broadcast %3 : vector<1x128xf32> to vector<8x128xf32>
    %5 = arith.addf %2, %4 : vector<8x128xf32>
    %cst_5 = arith.constant 0.000000e+00 : f32
    %6 = vector.broadcast %cst_5 : f32 to vector<8x128xf32>
    %7 = arith.cmpf ogt, %5, %6 : vector<8x128xf32>
    %cst_6 = arith.constant 2.000000e-01 : f32
    %8 = vector.broadcast %cst_6 : f32 to vector<8x128xf32>
    %9 = arith.mulf %8, %5 : vector<8x128xf32>
    %10 = arith.select %7, %5, %9 : vector<8x128xi1>, vector<8x128xf32>
    %11 = arith.truncf %10 : vector<8x128xf32> to vector<8x128xbf16>
    %c0_7 = arith.constant 0 : index
    %c0_8 = arith.constant 0 : index
    %12 = vector.load %arg4[%c0_7, %c0_8] : memref<128x256xbf16, #tpu.memory_space<vmem>>, vector<128x256xbf16>
    %cst_9 = arith.constant dense<0.000000e+00> : vector<8x256xf32>
    %13 = tpu.matmul %11, %12, %cst_9 {dimension_numbers = #tpu.dot_dimension_numbers<[1], [0], [0], [1], [0, 0, 1, 1], [], []>} : vector<8x128xbf16>, vector<128x256xbf16>, vector<8x256xf32> -> vector<8x256xf32>
    %c0_10 = arith.constant 0 : index
    %c0_11 = arith.constant 0 : index
    %14 = vector.load %arg5[%c0_10, %c0_11] : memref<1x256xf32, #tpu.memory_space<vmem>>, vector<1x256xf32>
    %15 = vector.broadcast %14 : vector<1x256xf32> to vector<8x256xf32>
    %16 = arith.addf %13, %15 : vector<8x256xf32>
    %cst_12 = arith.constant 0.000000e+00 : f32
    %17 = vector.broadcast %cst_12 : f32 to vector<8x256xf32>
    %18 = arith.cmpf ogt, %16, %17 : vector<8x256xf32>
    %cst_13 = arith.constant 2.000000e-01 : f32
    %19 = vector.broadcast %cst_13 : f32 to vector<8x256xf32>
    %20 = arith.mulf %19, %16 : vector<8x256xf32>
    %21 = arith.select %18, %16, %20 : vector<8x256xi1>, vector<8x256xf32>
    %22 = arith.truncf %21 : vector<8x256xf32> to vector<8x256xbf16>
    %c0_14 = arith.constant 0 : index
    %c0_15 = arith.constant 0 : index
    %23 = vector.load %arg6[%c0_14, %c0_15] : memref<256x128xbf16, #tpu.memory_space<vmem>>, vector<256x128xbf16>
    %cst_16 = arith.constant dense<0.000000e+00> : vector<8x128xf32>
    %24 = tpu.matmul %22, %23, %cst_16 {dimension_numbers = #tpu.dot_dimension_numbers<[1], [0], [0], [1], [0, 0, 1, 1], [], []>} : vector<8x256xbf16>, vector<256x128xbf16>, vector<8x128xf32> -> vector<8x128xf32>
    %c0_17 = arith.constant 0 : index
    %c0_18 = arith.constant 0 : index
    %25 = vector.load %arg7[%c0_17, %c0_18] : memref<1x128xf32, #tpu.memory_space<vmem>>, vector<1x128xf32>
    %26 = vector.broadcast %25 : vector<1x128xf32> to vector<8x128xf32>
    %27 = arith.addf %24, %26 : vector<8x128xf32>
    %28 = math.tanh %27 : vector<8x128xf32>
    %c0_19 = arith.constant 0 : index
    %c0_20 = arith.constant 0 : index
    %29 = vector.load %arg8[%c0_19, %c0_20] : memref<8x128xf32, #tpu.memory_space<vmem>>, vector<8x128xf32>
    tpu.vector_store %arg8[%c0_19, %c0_20], %28 {strides = array<i32>} : memref<8x128xf32, #tpu.memory_space<vmem>>, vector<8x128xf32>,
    return
  }
  func.func @transform_0(%arg0: i32) -> (i32, i32) {
    %c0_i32 = arith.constant 0 : i32
    %c0_i32_0 = arith.constant 0 : i32
    return %arg0, %c0_i32 : i32, i32
  }
  func.func @transform_1(%arg0: i32) -> (i32, i32) {
    %c0_i32 = arith.constant 0 : i32
    %c0_i32_0 = arith.constant 0 : i32
    %c0_i32_1 = arith.constant 0 : i32
    return %c0_i32, %c0_i32_0 : i32, i32
  }
  func.func @transform_2(%arg0: i32) -> (i32, i32) {
    %c0_i32 = arith.constant 0 : i32
    %c0_i32_0 = arith.constant 0 : i32
    %c0_i32_1 = arith.constant 0 : i32
    return %c0_i32, %c0_i32_0 : i32, i32
  }
  func.func @transform_3(%arg0: i32) -> (i32, i32) {
    %c0_i32 = arith.constant 0 : i32
    %c0_i32_0 = arith.constant 0 : i32
    %c0_i32_1 = arith.constant 0 : i32
    return %c0_i32, %c0_i32_0 : i32, i32
  }
  func.func @transform_4(%arg0: i32) -> (i32, i32) {
    %c0_i32 = arith.constant 0 : i32
    %c0_i32_0 = arith.constant 0 : i32
    %c0_i32_1 = arith.constant 0 : i32
    return %c0_i32, %c0_i32_0 : i32, i32
  }
  func.func @transform_5(%arg0: i32) -> (i32, i32) {
    %c0_i32 = arith.constant 0 : i32
    %c0_i32_0 = arith.constant 0 : i32
    %c0_i32_1 = arith.constant 0 : i32
    return %c0_i32, %c0_i32_0 : i32, i32
  }
  func.func @transform_6(%arg0: i32) -> (i32, i32) {
    %c0_i32 = arith.constant 0 : i32
    %c0_i32_0 = arith.constant 0 : i32
    %c0_i32_1 = arith.constant 0 : i32
    return %c0_i32, %c0_i32_0 : i32, i32
  }
  func.func @transform_7(%arg0: i32) -> (i32, i32) {
    %c0_i32 = arith.constant 0 : i32
    %c0_i32_0 = arith.constant 0 : i32
    return %arg0, %c0_i32 : i32, i32
  }
}

</mosaic_0001>

<llo_original>
// kernel: tpu_custom_call.1
$region0: #{tpu_custom_call.1}
  #allocation0 [shape = 'u32[]', space=smem, size = 0x4, offset = 0x4, fixed_abs, tag = 'smem constant byte address 0x4 - core index']
  #allocation1 [shape = 'u32[144,128]{1,0:T(1,128)}', space=vmem, size = 0x12000, scoped, tag = 'internal scratch']
  %s0 = inlined_call_operand.hbm [shape: bf16[8,128], index: 0, kind: input, shape index: {}]
  %s1 = inlined_call_operand.hbm [shape: bf16[128,128], index: 1, kind: input, shape index: {}]
  %s2 = inlined_call_operand.vmem [shape: f32[1,128], index: 2, kind: input, shape index: {}]
  %s3 = inlined_call_operand.hbm [shape: bf16[128,256], index: 3, kind: input, shape index: {}]
  %s4 = inlined_call_operand.vmem [shape: f32[1,256], index: 4, kind: input, shape index: {}]
  %s5 = inlined_call_operand.hbm [shape: bf16[256,128], index: 5, kind: input, shape index: {}]
  %s6 = inlined_call_operand.vmem [shape: f32[1,128], index: 6, kind: input, shape index: {}]
  %s7 = inlined_call_operand.hbm [shape: f32[8,128], index: 7, kind: output, shape index: {}]
  %s8 = sld [smem:[#allocation0]]
  $region54: #{tpu_custom_call.1} parent=0
    _
  %s10 = ssub.s32 1, %s8
  %s11 = scalar_select 0, %s10, %s8
  $region1: #{tpu_custom_call.1} parent=0
    #allocation2 [shape = 'u8[2048]{0}', space=vmem, size = 0x800, scoped, tag = 'input window, operand 0, single buffered']
    #allocation3 [shape = 's32[1]{0}', space=sflag, size = 0x4, scoped, tag = 'scoped memory for tpu_custom_call.1']
    #allocation4 [shape = 's32[1]{0}', space=sflag, size = 0x4, scoped, tag = 'scoped memory for tpu_custom_call.1']
    #allocation5 [shape = 'u8[32768]{0}', space=vmem, size = 0x8000, scoped, tag = 'input window, operand 1, single buffered']
    #allocation6 [shape = 's32[1]{0}', space=sflag, size = 0x4, scoped, tag = 'scoped memory for tpu_custom_call.1']
    #allocation7 [shape = 'u8[65536]{0}', space=vmem, size = 0x10000, scoped, tag = 'input window, operand 3, single buffered']
    #allocation8 [shape = 'u8[65536]{0}', space=vmem, size = 0x10000, scoped, tag = 'input window, operand 5, single buffered']
    #allocation9 [shape = 's32[1]{0}', space=sflag, size = 0x4, scoped, tag = 'scoped memory for tpu_custom_call.1']
    #allocation10 [shape = 'u8[4096]{0}', space=vmem, size = 0x1000, scoped, tag = 'output window, operand 0, single buffered']
    %12 = vsyncpa [#allocation3], 0
    %13 = vsyncpa [#allocation6], 0
    %14 = vsyncpa [#allocation9], 0
    %15 = vsyncpa [#allocation4], 0
    // Predicated region
    $region2: #{tpu_custom_call.1} parent=1 // pred_check
      _
    $region3: #{tpu_custom_call.1} parent=1 // pred_check_branch
      %17 = sbr.rel (0) target = $region5
    $region4: #{tpu_custom_call.1} parent=1 // pred_region
      %s19 = ssub.s32 64, 64
      %20 = vsyncadd [#allocation3], %s19
      %s22 = sshll.u32 [#allocation2], 4
      %s23 = int_to_ptr.vmem [resolvable:$true] %s22
      %25 = dma.hbm_to_vmem [thread:$0]  %s0, 64, %s23, [#allocation3]
    $region5: #{tpu_custom_call.1} parent=1 // pred_fallthru
      _
    // Predicated region
    $region6: #{tpu_custom_call.1} parent=1 // pred_check
      _
    $region7: #{tpu_custom_call.1} parent=1 // pred_check_branch
      %27 = sbr.rel (0) target = $region9
    $region8: #{tpu_custom_call.1} parent=1 // pred_region
      %s29 = ssub.s32 1024, 1024
      %30 = vsyncadd [#allocation6], %s29
      %s31 = sshll.u32 [#allocation5], 4
      %s32 = int_to_ptr.vmem [resolvable:$true] %s31
      %37 = dma.hbm_to_vmem [thread:$0]  %s1, 1024, %s32, [#allocation6], 64, 64, 4
    $region9: #{tpu_custom_call.1} parent=1 // pred_fallthru
      _
    // Predicated region
    $region10: #{tpu_custom_call.1} parent=1 // pred_check
      _
    $region11: #{tpu_custom_call.1} parent=1 // pred_check_branch
      %39 = sbr.rel (0) target = $region13
    $region12: #{tpu_custom_call.1} parent=1 // pred_region
      _
    $region13: #{tpu_custom_call.1} parent=1 // pred_fallthru
      _
    // Predicated region
    $region14: #{tpu_custom_call.1} parent=1 // pred_check
      _
    $region15: #{tpu_custom_call.1} parent=1 // pred_check_branch
      %41 = sbr.rel (0) target = $region17
    $region16: #{tpu_custom_call.1} parent=1 // pred_region
      %s43 = ssub.s32 2048, 2048
      %44 = vsyncadd [#allocation6], %s43
      %s45 = sshll.u32 [#allocation7], 4
      %s46 = int_to_ptr.vmem [resolvable:$true] %s45
      %51 = dma.hbm_to_vmem [thread:$0]  %s3, 2048, %s46, [#allocation6], 128, 128, 8
    $region17: #{tpu_custom_call.1} parent=1 // pred_fallthru
      _
    // Predicated region
    $region18: #{tpu_custom_call.1} parent=1 // pred_check
      _
    $region19: #{tpu_custom_call.1} parent=1 // pred_check_branch
      %53 = sbr.rel (0) target = $region21
    $region20: #{tpu_custom_call.1} parent=1 // pred_region
      _
    $region21: #{tpu_custom_call.1} parent=1 // pred_fallthru
      _
    // Predicated region
    $region22: #{tpu_custom_call.1} parent=1 // pred_check
      _
    $region23: #{tpu_custom_call.1} parent=1 // pred_check_branch
      %55 = sbr.rel (0) target = $region25
    $region24: #{tpu_custom_call.1} parent=1 // pred_region
      %s57 = ssub.s32 2048, 2048
      %58 = vsyncadd [#allocation9], %s57
      %s59 = sshll.u32 [#allocation8], 4
      %s60 = int_to_ptr.vmem [resolvable:$true] %s59
      %65 = dma.hbm_to_vmem [thread:$0]  %s5, 2048, %s60, [#allocation9], 64, 64, 4
    $region25: #{tpu_custom_call.1} parent=1 // pred_fallthru
      _
    // Predicated region
    $region26: #{tpu_custom_call.1} parent=1 // pred_check
      _
    $region27: #{tpu_custom_call.1} parent=1 // pred_check_branch
      %67 = sbr.rel (0) target = $region29
    $region28: #{tpu_custom_call.1} parent=1 // pred_region
      _
    $region29: #{tpu_custom_call.1} parent=1 // pred_fallthru
      _
    // Predicated region
    $region30: #{tpu_custom_call.1} parent=1 // pred_check
      _
    $region31: #{tpu_custom_call.1} parent=1 // pred_check_branch
      %69 = sbr.rel (0) target = $region33
    $region32: #{tpu_custom_call.1} parent=1 // pred_region
      %70 = dma.done [#allocation3], 64
    $region33: #{tpu_custom_call.1} parent=1 // pred_fallthru
      _
    // Predicated region
    $region34: #{tpu_custom_call.1} parent=1 // pred_check
      _
    $region35: #{tpu_custom_call.1} parent=1 // pred_check_branch
      %72 = sbr.rel (0) target = $region37
    $region36: #{tpu_custom_call.1} parent=1 // pred_region
      %73 = dma.done [#allocation6], 1024
    $region37: #{tpu_custom_call.1} parent=1 // pred_fallthru
      _
    // Predicated region
    $region38: #{tpu_custom_call.1} parent=1 // pred_check
      _
    $region39: #{tpu_custom_call.1} parent=1 // pred_check_branch
      %75 = sbr.rel (0) target = $region41
    $region40: #{tpu_custom_call.1} parent=1 // pred_region
      %76 = dma.done [#allocation6], 2048
    $region41: #{tpu_custom_call.1} parent=1 // pred_fallthru
      _
    // Predicated region
    $region42: #{tpu_custom_call.1} parent=1 // pred_check
      _
    $region43: #{tpu_custom_call.1} parent=1 // pred_check_branch
      %78 = sbr.rel (0) target = $region45
    $region44: #{tpu_custom_call.1} parent=1 // pred_region
      %79 = dma.done [#allocation9], 2048
    $region45: #{tpu_custom_call.1} parent=1 // pred_fallthru
      _
    %v81 = vld [vmem:[#allocation2] sm:$0xf]
    %v82 = vld [vmem:[#allocation5] sm:$0xf]
    %v83 = vld [vmem:[#allocation5 + $0x4] sm:$0xf]
    %v84 = vld [vmem:[#allocation5 + $0x8] sm:$0xf]
    %v85 = vld [vmem:[#allocation5 + $0xc] sm:$0xf]
    %v86 = vld [vmem:[#allocation5 + $0x10] sm:$0xf]
    %v87 = vld [vmem:[#allocation5 + $0x14] sm:$0xf]
    %v88 = vld [vmem:[#allocation5 + $0x18] sm:$0xf]
    %v89 = vld [vmem:[#allocation5 + $0x1c] sm:$0xf]
    %v90 = vld [vmem:[#allocation5 + $0x20] sm:$0xf]
    %v91 = vld [vmem:[#allocation5 + $0x24] sm:$0xf]
    %v92 = vld [vmem:[#allocation5 + $0x28] sm:$0xf]
    %v93 = vld [vmem:[#allocation5 + $0x2c] sm:$0xf]
    %v94 = vld [vmem:[#allocation5 + $0x30] sm:$0xf]
    %v95 = vld [vmem:[#allocation5 + $0x34] sm:$0xf]
    %v96 = vld [vmem:[#allocation5 + $0x38] sm:$0xf]
    %v97 = vld [vmem:[#allocation5 + $0x3c] sm:$0xf]
    %v98 = vld [vmem:[%s2] sm:$0x1]
    %v100 = vlaneseq
    %v101 = vshrl.u32 %v100, 7
    %v102 = vsub.s32 0, %v101
    %v103 = vrot.slane %v98, %v102
    %v121 = vunpack.c.l.b16 %v82
    %v122 = vunpack.c.l.b16 %v83
    %v123 = vunpack.c.l.b16 %v84
    %v124 = vunpack.c.l.b16 %v85
    %v125 = vunpack.c.l.b16 %v86
    %v126 = vunpack.c.l.b16 %v87
    %v127 = vunpack.c.l.b16 %v88
    %v128 = vunpack.c.l.b16 %v89
    %v129 = vunpack.c.l.b16 %v90
    %v130 = vunpack.c.l.b16 %v91
    %v131 = vunpack.c.l.b16 %v92
    %v132 = vunpack.c.l.b16 %v93
    %v133 = vunpack.c.l.b16 %v94
    %v134 = vunpack.c.l.b16 %v95
    %v135 = vunpack.c.l.b16 %v96
    %v136 = vunpack.c.l.b16 %v97
    %v137 = vpack.c.b16 %v122, %v121
    %v138 = vpack.c.b16 %v124, %v123
    %v139 = vpack.c.b16 %v126, %v125
    %v140 = vpack.c.b16 %v128, %v127
    %v141 = vpack.c.b16 %v130, %v129
    %v142 = vpack.c.b16 %v132, %v131
    %v143 = vpack.c.b16 %v134, %v133
    %v144 = vpack.c.b16 %v136, %v135
    %153 = vmatprep.subr.bf16.mxu0 0
    %154 = vmatpush1.bf16.msra.mxu0 %v137
    %155 = vmatprep.subr.bf16.mxu0 0
    %156 = vmatpush1.bf16.msra.mxu0 %v138
    %157 = vmatprep.subr.bf16.mxu0 0
    %158 = vmatpush1.bf16.msra.mxu0 %v139
    %159 = vmatprep.subr.bf16.mxu0 0
    %160 = vmatpush1.bf16.msra.mxu0 %v140
    %161 = vmatprep.subr.bf16.mxu0 0
    %162 = vmatpush1.bf16.msra.mxu0 %v141
    %163 = vmatprep.subr.bf16.mxu0 0
    %164 = vmatpush1.bf16.msra.mxu0 %v142
    %165 = vmatprep.subr.bf16.mxu0 0
    %166 = vmatpush1.bf16.msra.mxu0 %v143
    %167 = vmatprep.subr.bf16.mxu0 0
    %168 = vmatpush1.bf16.msra.mxu0 %v144
    %169 = vmatprep.subr.bf16.mxu0 0
    %170 = vmatpush1.bf16.msra.mxu0 0
    %171 = vmatprep.subr.bf16.mxu0 0
    %172 = vmatpush1.bf16.msra.mxu0 0
    %173 = vmatprep.subr.bf16.mxu0 0
    %174 = vmatpush1.bf16.msra.mxu0 0
    %175 = vmatprep.subr.bf16.mxu0 0
    %176 = vmatpush1.bf16.msra.mxu0 0
    %177 = vmatprep.subr.bf16.mxu0 0
    %178 = vmatpush1.bf16.msra.mxu0 0
    %179 = vmatprep.subr.bf16.mxu0 0
    %180 = vmatpush1.bf16.msra.mxu0 0
    %181 = vmatprep.subr.bf16.mxu0 0
    %182 = vmatpush1.bf16.msra.mxu0 0
    %183 = vmatprep.subr.bf16.mxu0 0
    %184 = vmatpush1.bf16.msra.mxu0 0
    %185 = vmatprep.mubr.bf16.mxu0 0
    %186 = vmatmul.mubr.bf16.gmra.mrb[0].mxu0 %v81
    %v187 = vpop.f32.mrb[0].mxu0
    %v188 = vadd.f32 %v103, %v187
    %v189 = vpop.f32.mrb[0].mxu0
    %v190 = vpop.f32.mrb[0].mxu0
    %v191 = vpop.f32.mrb[0].mxu0
    %192 = vdwg.mxu0
    %vm193 = vcmp.gt.f32.partialorder %v188, 0.0
    %v194 = vmul.f32 %v188, 0.2
    %v195 = vsel %vm193, %v188, %v194
    %v196 = vpack.c.bf16 %v195, %v195
    %v197 = vld [vmem:[#allocation7] sm:$0xff]
    %v198 = vld [vmem:[#allocation7 + $0x8] sm:$0xff]
    %v199 = vld [vmem:[#allocation7 + $0x10] sm:$0xff]
    %v200 = vld [vmem:[#allocation7 + $0x18] sm:$0xff]
    %v201 = vld [vmem:[#allocation7 + $0x20] sm:$0xff]
    %v202 = vld [vmem:[#allocation7 + $0x28] sm:$0xff]
    %v203 = vld [vmem:[#allocation7 + $0x30] sm:$0xff]
    %v204 = vld [vmem:[#allocation7 + $0x38] sm:$0xff]
    %v205 = vld [vmem:[#allocation7 + $0x40] sm:$0xff]
    %v206 = vld [vmem:[#allocation7 + $0x48] sm:$0xff]
    %v207 = vld [vmem:[#allocation7 + $0x50] sm:$0xff]
    %v208 = vld [vmem:[#allocation7 + $0x58] sm:$0xff]
    %v209 = vld [vmem:[#allocation7 + $0x60] sm:$0xff]
    %v210 = vld [vmem:[#allocation7 + $0x68] sm:$0xff]
    %v211 = vld [vmem:[#allocation7 + $0x70] sm:$0xff]
    %v212 = vld [vmem:[#allocation7 + $0x78] sm:$0xff]
    %v213 = vld [vmem:[%s4] sm:$0x3]
    %v215 = vlaneseq
    %v216 = vshrl.u32 %v215, 7
    %v217 = vsub.s32 0, %v216
    %v218 = vrot.slane %v213, %v217
    %v219 = vlaneseq
    %v220 = vshrl.u32 %v219, 7
    %v221 = vsub.s32 1, %v220
    %v222 = vrot.slane %v213, %v221
    %v241 = vunpack.c.l.b16 %v197
    %v242 = vunpack.c.h.b16 %v197
    %v243 = vunpack.c.l.b16 %v198
    %v244 = vunpack.c.h.b16 %v198
    %v245 = vunpack.c.l.b16 %v199
    %v246 = vunpack.c.h.b16 %v199
    %v247 = vunpack.c.l.b16 %v200
    %v248 = vunpack.c.h.b16 %v200
    %v249 = vunpack.c.l.b16 %v201
    %v250 = vunpack.c.h.b16 %v201
    %v251 = vunpack.c.l.b16 %v202
    %v252 = vunpack.c.h.b16 %v202
    %v253 = vunpack.c.l.b16 %v203
    %v254 = vunpack.c.h.b16 %v203
    %v255 = vunpack.c.l.b16 %v204
    %v256 = vunpack.c.h.b16 %v204
    %v257 = vunpack.c.l.b16 %v205
    %v258 = vunpack.c.h.b16 %v205
    %v259 = vunpack.c.l.b16 %v206
    %v260 = vunpack.c.h.b16 %v206
    %v261 = vunpack.c.l.b16 %v207
    %v262 = vunpack.c.h.b16 %v207
    %v263 = vunpack.c.l.b16 %v208
    %v264 = vunpack.c.h.b16 %v208
    %v265 = vunpack.c.l.b16 %v209
    %v266 = vunpack.c.h.b16 %v209
    %v267 = vunpack.c.l.b16 %v210
    %v268 = vunpack.c.h.b16 %v210
    %v269 = vunpack.c.l.b16 %v211
    %v270 = vunpack.c.h.b16 %v211
    %v271 = vunpack.c.l.b16 %v212
    %v272 = vunpack.c.h.b16 %v212
    %v273 = vpack.c.b16 %v243, %v241
    %v274 = vpack.c.b16 %v244, %v242
    %v275 = vpack.c.b16 %v247, %v245
    %v276 = vpack.c.b16 %v248, %v246
    %v277 = vpack.c.b16 %v251, %v249
    %v278 = vpack.c.b16 %v252, %v250
    %v279 = vpack.c.b16 %v255, %v253
    %v280 = vpack.c.b16 %v256, %v254
    %v281 = vpack.c.b16 %v259, %v257
    %v282 = vpack.c.b16 %v260, %v258
    %v283 = vpack.c.b16 %v263, %v261
    %v284 = vpack.c.b16 %v264, %v262
    %v285 = vpack.c.b16 %v267, %v265
    %v286 = vpack.c.b16 %v268, %v266
    %v287 = vpack.c.b16 %v271, %v269
    %v288 = vpack.c.b16 %v272, %v270
    %305 = vmatprep.subr.bf16.mxu0 %v274
    %306 = vmatpush1.bf16.msra.mxu0 %v273
    %307 = vmatprep.subr.bf16.mxu0 %v276
    %308 = vmatpush1.bf16.msra.mxu0 %v275
    %309 = vmatprep.subr.bf16.mxu0 %v278
    %310 = vmatpush1.bf16.msra.mxu0 %v277
    %311 = vmatprep.subr.bf16.mxu0 %v280
    %312 = vmatpush1.bf16.msra.mxu0 %v279
    %313 = vmatprep.subr.bf16.mxu0 %v282
    %314 = vmatpush1.bf16.msra.mxu0 %v281
    %315 = vmatprep.subr.bf16.mxu0 %v284
    %316 = vmatpush1.bf16.msra.mxu0 %v283
    %317 = vmatprep.subr.bf16.mxu0 %v286
    %318 = vmatpush1.bf16.msra.mxu0 %v285
    %319 = vmatprep.subr.bf16.mxu0 %v288
    %320 = vmatpush1.bf16.msra.mxu0 %v287
    %321 = vmatprep.subr.bf16.mxu0 0
    %322 = vmatpush1.bf16.msra.mxu0 0
    %323 = vmatprep.subr.bf16.mxu0 0
    %324 = vmatpush1.bf16.msra.mxu0 0
    %325 = vmatprep.subr.bf16.mxu0 0
    %326 = vmatpush1.bf16.msra.mxu0 0
    %327 = vmatprep.subr.bf16.mxu0 0
    %328 = vmatpush1.bf16.msra.mxu0 0
    %329 = vmatprep.subr.bf16.mxu0 0
    %330 = vmatpush1.bf16.msra.mxu0 0
    %331 = vmatprep.subr.bf16.mxu0 0
    %332 = vmatpush1.bf16.msra.mxu0 0
    %333 = vmatprep.subr.bf16.mxu0 0
    %334 = vmatpush1.bf16.msra.mxu0 0
    %335 = vmatprep.subr.bf16.mxu0 0
    %336 = vmatpush1.bf16.msra.mxu0 0
    %337 = vmatprep.mubr.bf16.mxu0 0
    %338 = vmatmul.mubr.bf16.gmra.mrb[0].mxu0 %v196
    %v339 = vpop.f32.mrb[0].mxu0
    %v340 = vadd.f32 %v218, %v339
    %v341 = vpop.f32.mrb[0].mxu0
    %v342 = vadd.f32 %v222, %v341
    %v343 = vpop.f32.mrb[0].mxu0
    %v344 = vpop.f32.mrb[0].mxu0
    %345 = vdwg.mxu0
    %vm346 = vcmp.gt.f32.partialorder %v340, 0.0
    %vm347 = vcmp.gt.f32.partialorder %v342, 0.0
    %v348 = vmul.f32 %v340, 0.2
    %v349 = vmul.f32 %v342, 0.2
    %v350 = vsel %vm346, %v340, %v348
    %v351 = vsel %vm347, %v342, %v349
    %v352 = vpack.c.bf16 %v350, %v350
    %v353 = vpack.c.bf16 %v351, %v351
    %v354 = vld [vmem:[#allocation8] sm:$0xf]
    %v355 = vld [vmem:[#allocation8 + $0x4] sm:$0xf]
    %v356 = vld [vmem:[#allocation8 + $0x8] sm:$0xf]
    %v357 = vld [vmem:[#allocation8 + $0xc] sm:$0xf]
    %v358 = vld [vmem:[#allocation8 + $0x10] sm:$0xf]
    %v359 = vld [vmem:[#allocation8 + $0x14] sm:$0xf]
    %v360 = vld [vmem:[#allocation8 + $0x18] sm:$0xf]
    %v361 = vld [vmem:[#allocation8 + $0x1c] sm:$0xf]
    %v362 = vld [vmem:[#allocation8 + $0x20] sm:$0xf]
    %v363 = vld [vmem:[#allocation8 + $0x24] sm:$0xf]
    %v364 = vld [vmem:[#allocation8 + $0x28] sm:$0xf]
    %v365 = vld [vmem:[#allocation8 + $0x2c] sm:$0xf]
    %v366 = vld [vmem:[#allocation8 + $0x30] sm:$0xf]
    %v367 = vld [vmem:[#allocation8 + $0x34] sm:$0xf]
    %v368 = vld [vmem:[#allocation8 + $0x38] sm:$0xf]
    %v369 = vld [vmem:[#allocation8 + $0x3c] sm:$0xf]
    %v370 = vld [vmem:[#allocation8 + $0x40] sm:$0xf]
    %v371 = vld [vmem:[#allocation8 + $0x44] sm:$0xf]
    %v372 = vld [vmem:[#allocation8 + $0x48] sm:$0xf]
    %v373 = vld [vmem:[#allocation8 + $0x4c] sm:$0xf]
    %v374 = vld [vmem:[#allocation8 + $0x50] sm:$0xf]
    %v375 = vld [vmem:[#allocation8 + $0x54] sm:$0xf]
    %v376 = vld [vmem:[#allocation8 + $0x58] sm:$0xf]
    %v377 = vld [vmem:[#allocation8 + $0x5c] sm:$0xf]
    %v378 = vld [vmem:[#allocation8 + $0x60] sm:$0xf]
    %v379 = vld [vmem:[#allocation8 + $0x64] sm:$0xf]
    %v380 = vld [vmem:[#allocation8 + $0x68] sm:$0xf]
    %v381 = vld [vmem:[#allocation8 + $0x6c] sm:$0xf]
    %v382 = vld [vmem:[#allocation8 + $0x70] sm:$0xf]
    %v383 = vld [vmem:[#allocation8 + $0x74] sm:$0xf]
    %v384 = vld [vmem:[#allocation8 + $0x78] sm:$0xf]
    %v385 = vld [vmem:[#allocation8 + $0x7c] sm:$0xf]
    %v386 = vld [vmem:[%s6] sm:$0x1]
    %v388 = vlaneseq
    %v389 = vshrl.u32 %v388, 7
    %v390 = vsub.s32 0, %v389
    %v391 = vrot.slane %v386, %v390
    %v425 = vunpack.c.l.b16 %v354
    %v426 = vunpack.c.l.b16 %v355
    %v427 = vunpack.c.l.b16 %v356
    %v428 = vunpack.c.l.b16 %v357
    %v429 = vunpack.c.l.b16 %v358
    %v430 = vunpack.c.l.b16 %v359
    %v431 = vunpack.c.l.b16 %v360
    %v432 = vunpack.c.l.b16 %v361
    %v433 = vunpack.c.l.b16 %v362
    %v434 = vunpack.c.l.b16 %v363
    %v435 = vunpack.c.l.b16 %v364
    %v436 = vunpack.c.l.b16 %v365
    %v437 = vunpack.c.l.b16 %v366
    %v438 = vunpack.c.l.b16 %v367
    %v439 = vunpack.c.l.b16 %v368
    %v440 = vunpack.c.l.b16 %v369
    %v441 = vunpack.c.l.b16 %v370
    %v442 = vunpack.c.l.b16 %v371
    %v443 = vunpack.c.l.b16 %v372
    %v444 = vunpack.c.l.b16 %v373
    %v445 = vunpack.c.l.b16 %v374
    %v446 = vunpack.c.l.b16 %v375
    %v447 = vunpack.c.l.b16 %v376
    %v448 = vunpack.c.l.b16 %v377
    %v449 = vunpack.c.l.b16 %v378
    %v450 = vunpack.c.l.b16 %v379
    %v451 = vunpack.c.l.b16 %v380
    %v452 = vunpack.c.l.b16 %v381
    %v453 = vunpack.c.l.b16 %v382
    %v454 = vunpack.c.l.b16 %v383
    %v455 = vunpack.c.l.b16 %v384
    %v456 = vunpack.c.l.b16 %v385
    %v457 = vpack.c.b16 %v426, %v425
    %v458 = vpack.c.b16 %v428, %v427
    %v459 = vpack.c.b16 %v430, %v429
    %v460 = vpack.c.b16 %v432, %v431
    %v461 = vpack.c.b16 %v434, %v433
    %v462 = vpack.c.b16 %v436, %v435
    %v463 = vpack.c.b16 %v438, %v437
    %v464 = vpack.c.b16 %v440, %v439
    %v465 = vpack.c.b16 %v442, %v441
    %v466 = vpack.c.b16 %v444, %v443
    %v467 = vpack.c.b16 %v446, %v445
    %v468 = vpack.c.b16 %v448, %v447
    %v469 = vpack.c.b16 %v450, %v449
    %v470 = vpack.c.b16 %v452, %v451
    %v471 = vpack.c.b16 %v454, %v453
    %v472 = vpack.c.b16 %v456, %v455
    %489 = vmatprep.subr.bf16.mxu0 0
    %490 = vmatpush1.bf16.msra.mxu0 %v457
    %491 = vmatprep.subr.bf16.mxu0 0
    %492 = vmatpush1.bf16.msra.mxu0 %v458
    %493 = vmatprep.subr.bf16.mxu0 0
    %494 = vmatpush1.bf16.msra.mxu0 %v459
    %495 = vmatprep.subr.bf16.mxu0 0
    %496 = vmatpush1.bf16.msra.mxu0 %v460
    %497 = vmatprep.subr.bf16.mxu0 0
    %498 = vmatpush1.bf16.msra.mxu0 %v461
    %499 = vmatprep.subr.bf16.mxu0 0
    %500 = vmatpush1.bf16.msra.mxu0 %v462
    %501 = vmatprep.subr.bf16.mxu0 0
    %502 = vmatpush1.bf16.msra.mxu0 %v463
    %503 = vmatprep.subr.bf16.mxu0 0
    %504 = vmatpush1.bf16.msra.mxu0 %v464
    %505 = vmatprep.subr.bf16.mxu0 0
    %506 = vmatpush1.bf16.msra.mxu0 %v465
    %507 = vmatprep.subr.bf16.mxu0 0
    %508 = vmatpush1.bf16.msra.mxu0 %v466
    %509 = vmatprep.subr.bf16.mxu0 0
    %510 = vmatpush1.bf16.msra.mxu0 %v467
    %511 = vmatprep.subr.bf16.mxu0 0
    %512 = vmatpush1.bf16.msra.mxu0 %v468
    %513 = vmatprep.subr.bf16.mxu0 0
    %514 = vmatpush1.bf16.msra.mxu0 %v469
    %515 = vmatprep.subr.bf16.mxu0 0
    %516 = vmatpush1.bf16.msra.mxu0 %v470
    %517 = vmatprep.subr.bf16.mxu0 0
    %518 = vmatpush1.bf16.msra.mxu0 %v471
    %519 = vmatprep.subr.bf16.mxu0 0
    %520 = vmatpush1.bf16.msra.mxu0 %v472
    %521 = vmatprep.mubr.bf16.mxu0 %v353
    %522 = vmatmul.mubr.bf16.gmra.mrb[0].mxu0 %v352
    %v523 = vpop.f32.mrb[0].mxu0
    %v524 = vadd.f32 %v391, %v523
    %v525 = vpop.f32.mrb[0].mxu0
    %v526 = vpop.f32.mrb[0].mxu0
    %v527 = vpop.f32.mrb[0].mxu0
    %528 = vdwg.mxu0
    %v529 = vtanh.pop %v524
    %530 = vst [vmem:[#allocation10] sm:$0xff] %v529
    // Predicated region
    $region46: #{tpu_custom_call.1} parent=1 // pred_check
      _
    $region47: #{tpu_custom_call.1} parent=1 // pred_check_branch
      %532 = sbr.rel (0) target = $region49
    $region48: #{tpu_custom_call.1} parent=1 // pred_region
      %s534 = ssub.s32 128, 128
      %535 = vsyncadd [#allocation4], %s534
      %s537 = sshll.u32 [#allocation10], 4
      %s538 = int_to_ptr.vmem [resolvable:$true] %s537
      %540 = dma.vmem_to_hbm [thread:$0]  %s538, 128, %s7, [#allocation4]
    $region49: #{tpu_custom_call.1} parent=1 // pred_fallthru
      _
    // Predicated region
    $region50: #{tpu_custom_call.1} parent=1 // pred_check
      _
    $region51: #{tpu_custom_call.1} parent=1 // pred_check_branch
      %542 = sbr.rel (0) target = $region53
    $region52: #{tpu_custom_call.1} parent=1 // pred_region
      %543 = dma.done [#allocation4], 128
    $region53: #{tpu_custom_call.1} parent=1 // pred_fallthru
      _
    %544 = vsyncpa [#allocation3], 1
    %545 = vsyncpa [#allocation6], 1
    %546 = vsyncpa [#allocation9], 1
    %547 = vsyncpa [#allocation4], 1

</llo_original>
